<compile_context>
chip_gen: v7x
topology: tpu7x:2x2x1
jax: 0.10.0
libtpu: 0.0.40
codegen_flags: <defaults>
</compile_context>

<pallas_src>
import jax
import jax.numpy as jnp
from jax.experimental import pallas as pl
from jax.experimental.pallas import tpu as pltpu

# AvgPool2d configs from AlexnetRegLog.__init__: conv -> (kernel, stride, padding)
# (stride == kernel for every branch, so pooling windows never overlap)
_POOL_CFG = {1: (6, 6, 3), 2: (4, 4, 0), 3: (3, 3, 1), 4: (3, 3, 1), 5: (2, 2, 0)}


def _round_up(n, m):
    return (n + m - 1) // m * m


def _reglog_matmul_kernel(x_ref, w_ref, b_ref, o_ref, acc_ref):
    """One (tb, tl) output tile, accumulated over the S (contraction) grid axis."""

    @pl.when(pl.program_id(2) == 0)
    def _():
        acc_ref[...] = jnp.zeros_like(acc_ref)

    acc_ref[...] += jnp.dot(x_ref[...], w_ref[...],
                            preferred_element_type=jnp.float32)

    @pl.when(pl.program_id(2) == pl.num_programs(2) - 1)
    def _():
        o_ref[...] = (acc_ref[...] + b_ref[...]).astype(o_ref.dtype)


def fold_pool_into_linear(weight, bias, conv, feat_shape, lane_pad=128):
    """Fold AvgPool2d (stride==kernel, count_include_pad=True, ceil_mode=False)
    into the linear layer.

    Returns (w_big, b_pad):
      w_big: (S_big_pad, L_pad) f32, where S_big = C*H*W (NCHW flatten order of
             the *unpooled* features) rounded up to a multiple of 128, and
             L_pad = num_labels rounded up to a multiple of `lane_pad`.
      b_pad: (1, L_pad) f32.
    The whole forward then becomes  x.reshape(B, -1) @ w_big + b_pad.
    """
    k, stride, p = _POOL_CFG[conv]
    assert k == stride, "all AlexnetRegLog pooling branches have stride == kernel"
    C, H, W = feat_shape
    OH = (H + 2 * p - k) // stride + 1          # floor mode (ceil_mode=False)
    OW = (W + 2 * p - k) // stride + 1
    L, S = weight.shape
    assert S == C * OH * OW, f"linear expects {C * OH * OW} features, got {S}"

    w4 = weight.reshape(L, C, OH, OW).astype(jnp.float32)
    # input row/col h maps to pooled window (h + p) // k; cropped if >= OH/OW
    oh = (jnp.arange(H) + p) // k
    ow = (jnp.arange(W) + p) // k
    mask = ((oh < OH)[:, None] & (ow < OW)[None, :]).astype(jnp.float32)  # (H, W)
    whw = w4[:, :, jnp.minimum(oh, OH - 1), :][:, :, :, jnp.minimum(ow, OW - 1)]
    whw = whw * (mask * (1.0 / (k * k)))        # fold the average scale in here
    w_big = whw.reshape(L, C * H * W).T         # (S_big, L)

    s_big = C * H * W
    s_pad = _round_up(s_big, 128)
    l_pad = _round_up(L, lane_pad)
    w_big = jnp.pad(w_big, ((0, s_pad - s_big), (0, l_pad - L)))
    b_pad = jnp.pad(bias.astype(jnp.float32), (0, l_pad - L)).reshape(1, l_pad)
    return w_big, b_pad


def reglog_matmul(x_flat, w_big, b_pad, *, tb=None, ts=None, tl=128):
    """y = x_flat @ w_big + b_pad as a tiled, pipelined Pallas matmul."""
    B, s_in = x_flat.shape
    s_pad, l_pad = w_big.shape
    if s_in != s_pad:
        # contraction dim was zero-padded on the weight side; pad x to match.
        x_flat = jnp.pad(x_flat, ((0, 0), (0, s_pad - s_in)))

    # --- tile selection ---
    if tb is None:
        if B <= 256:
            tb = B                                    # full-dim block is always legal
        else:
            tb = next((t for t in (256, 128, 64, 32, 16, 8) if B % t == 0), B)
    assert B % tb == 0 and (tb % 8 == 0 or tb == B)
    if ts is None:
        ts = next(t for t in (2048, 1024, 512, 256, 128) if s_pad % t == 0)
    assert s_pad % ts == 0 and ts % 128 == 0
    assert l_pad % tl == 0 and tl % 128 == 0

    grid = (B // tb, l_pad // tl, s_pad // ts)        # reduction axis last

    out = pl.pallas_call(
        _reglog_matmul_kernel,
        out_shape=jax.ShapeDtypeStruct((B, l_pad), jnp.float32),
        grid_spec=pltpu.PrefetchScalarGridSpec(
            num_scalar_prefetch=0,
            grid=grid,
            in_specs=[
                pl.BlockSpec((tb, ts), lambda i, j, kk: (i, kk)),   # x tile
                pl.BlockSpec((ts, tl), lambda i, j, kk: (kk, j)),   # folded weight tile
                pl.BlockSpec((1, tl), lambda i, j, kk: (0, j)),     # bias tile
            ],
            out_specs=pl.BlockSpec((tb, tl), lambda i, j, kk: (i, j)),
            scratch_shapes=[pltpu.VMEM((tb, tl), jnp.float32)],
        ),
        compiler_params=pltpu.CompilerParams(
            dimension_semantics=("parallel", "parallel", "arbitrary"),
            vmem_limit_bytes=32 * 1024 * 1024,
        ),
    )(x_flat, w_big, b_pad)
    return out


def alexnet_reglog_forward(x, weight, bias, conv):
    """x: (B, C, H, W) f32 NCHW; weight: (num_labels, C*OH*OW); bias: (num_labels,)."""
    B, C, H, W = x.shape
    L = weight.shape[0]
    w_big, b_pad = fold_pool_into_linear(weight, bias, conv, (C, H, W))
    x_flat = x.reshape(B, C * H * W).astype(jnp.float32)   # contiguous collapse: free
    out = reglog_matmul(x_flat, w_big, b_pad)
    return out[:, :L]


def _reference(x, weight, bias, conv):
    """Pure-JAX reference of the PyTorch forward for correctness checking."""
    k, stride, p = _POOL_CFG[conv]
    B = x.shape[0]
    xp = jnp.pad(x, ((0, 0), (0, 0), (p, p), (p, p)))
    pooled = jax.lax.reduce_window(
        xp, 0.0, jax.lax.add, (1, 1, k, k), (1, 1, stride, stride), "VALID"
    ) / (k * k)
    flat = pooled.reshape(B, -1)
    return flat @ weight.T + bias


if __name__ == "__main__":
    key = jax.random.PRNGKey(0)
    # Small shapes consistent with the module's forward:
    #   conv=5: AvgPool2d(2,2)   : (2,64,8,8) -> (64,4,4) -> Linear(1024,10)
    #   conv=3: AvgPool2d(3,3,1) : (2,64,9,9) -> (64,3,3) -> Linear(576,10)
    #           (exercises the padding + ceil_mode crop + ragged-S paths)
    configs = [
        (5, 2, 64, 8, 8, 10),
        (3, 2, 64, 9, 9, 10),
    ]
    for conv, B, C, H, W, L in configs:
        k, stride, p = _POOL_CFG[conv]
        OH = (H + 2 * p - k) // stride + 1
        OW = (W + 2 * p - k) // stride + 1
        S = C * OH * OW

        key, kx, kw, kb = jax.random.split(key, 4)
        x = jax.random.normal(kx, (B, C, H, W), dtype=jnp.float32)
        bound = 1.0 / (S ** 0.5)   # PyTorch default Linear init range
        weight = jax.random.uniform(kw, (L, S), jnp.float32, -bound, bound)
        bias = jax.random.uniform(kb, (L,), jnp.float32, -bound, bound)

        out = jax.block_until_ready(alexnet_reglog_forward(x, weight, bias, conv))
        ref = _reference(x, weight, bias, conv)
        assert out.shape == (B, L)
        if not jnp.allclose(out, ref, rtol=1e-4, atol=1e-4):
            err = float(jnp.max(jnp.abs(out - ref)))
            raise AssertionError(f"conv={conv}: mismatch vs reference, max abs err {err}")

    print("KERNEL_OK")
</pallas_src>

<mosaic_0001>
module attributes {stable_mosaic.version = 11 : i64} {
  func.func @_reglog_matmul_kernel(%arg0: i32, %arg1: i32, %arg2: i32, %arg3: memref<2x2048xf32, #tpu.memory_space<vmem>>, %arg4: memref<2048x128xf32, #tpu.memory_space<vmem>>, %arg5: memref<1x128xf32, #tpu.memory_space<vmem>>, %arg6: memref<2x128xf32, #tpu.memory_space<vmem>>, %arg7: memref<2x128xf32, #tpu.memory_space<vmem>>) attributes {dimension_semantics = [#tpu.dimension_semantics<parallel>, #tpu.dimension_semantics<parallel>, #tpu.dimension_semantics<arbitrary>], iteration_bounds = array<i64: 1, 1, 2>, scalar_prefetch = 0 : i64, scratch_operands = 1 : i64, tpu.core_type = #tpu.core_type<tc>, window_params = [{transform_indices = @transform_0, window_bounds = array<i64: 2, 2048>}, {transform_indices = @transform_1, window_bounds = array<i64: 2048, 128>}, {transform_indices = @transform_2, window_bounds = array<i64: 1, 128>}, {transform_indices = @transform_3, window_bounds = array<i64: 2, 128>}]} {
    %c0_i32 = arith.constant 0 : i32
    %0 = arith.cmpi eq, %arg2, %c0_i32 : i32
    %1 = arith.extui %0 : i1 to i32
    %c0_i32_0 = arith.constant 0 : i32
    %2 = arith.cmpi ne, %1, %c0_i32_0 : i32
    scf.if %2 {
      %cst_9 = arith.constant 0.000000e+00 : f32
      %12 = vector.broadcast %cst_9 : f32 to vector<2x128xf32>
      %c0_10 = arith.constant 0 : index
      %c0_11 = arith.constant 0 : index
      %13 = vector.load %arg7[%c0_10, %c0_11] : memref<2x128xf32, #tpu.memory_space<vmem>>, vector<2x128xf32>
      tpu.vector_store %arg7[%c0_10, %c0_11], %12 {strides = array<i32>} : memref<2x128xf32, #tpu.memory_space<vmem>>, vector<2x128xf32>,
    } else {
    }
    %c0 = arith.constant 0 : index
    %c0_1 = arith.constant 0 : index
    %3 = vector.load %arg7[%c0, %c0_1] : memref<2x128xf32, #tpu.memory_space<vmem>>, vector<2x128xf32>
    %c0_2 = arith.constant 0 : index
    %c0_3 = arith.constant 0 : index
    %4 = vector.load %arg3[%c0_2, %c0_3] : memref<2x2048xf32, #tpu.memory_space<vmem>>, vector<2x2048xf32>
    %c0_4 = arith.constant 0 : index
    %c0_5 = arith.constant 0 : index
    %5 = vector.load %arg4[%c0_4, %c0_5] : memref<2048x128xf32, #tpu.memory_space<vmem>>, vector<2048x128xf32>
    %cst = arith.constant dense<0.000000e+00> : vector<2x128xf32>
    %6 = tpu.matmul %4, %5, %cst {dimension_numbers = #tpu.dot_dimension_numbers<[1], [0], [0], [1], [0, 0, 1, 1], [], []>} : vector<2x2048xf32>, vector<2048x128xf32>, vector<2x128xf32> -> vector<2x128xf32>
    %7 = arith.addf %3, %6 : vector<2x128xf32>
    %c0_6 = arith.constant 0 : index
    %c0_7 = arith.constant 0 : index
    %8 = vector.load %arg7[%c0_6, %c0_7] : memref<2x128xf32, #tpu.memory_space<vmem>>, vector<2x128xf32>
    tpu.vector_store %arg7[%c0_6, %c0_7], %7 {strides = array<i32>} : memref<2x128xf32, #tpu.memory_space<vmem>>, vector<2x128xf32>,
    %c1_i32 = arith.constant 1 : i32
    %9 = arith.cmpi eq, %arg2, %c1_i32 : i32
    %10 = arith.extui %9 : i1 to i32
    %c0_i32_8 = arith.constant 0 : i32
    %11 = arith.cmpi ne, %10, %c0_i32_8 : i32
    scf.if %11 {
      %c0_9 = arith.constant 0 : index
      %c0_10 = arith.constant 0 : index
      %12 = vector.load %arg7[%c0_9, %c0_10] : memref<2x128xf32, #tpu.memory_space<vmem>>, vector<2x128xf32>
      %c0_11 = arith.constant 0 : index
      %c0_12 = arith.constant 0 : index
      %13 = vector.load %arg5[%c0_11, %c0_12] : memref<1x128xf32, #tpu.memory_space<vmem>>, vector<1x128xf32>
      %14 = vector.broadcast %13 : vector<1x128xf32> to vector<2x128xf32>
      %15 = arith.addf %12, %14 : vector<2x128xf32>
      %c0_13 = arith.constant 0 : index
      %c0_14 = arith.constant 0 : index
      %16 = vector.load %arg6[%c0_13, %c0_14] : memref<2x128xf32, #tpu.memory_space<vmem>>, vector<2x128xf32>
      tpu.vector_store %arg6[%c0_13, %c0_14], %15 {strides = array<i32>} : memref<2x128xf32, #tpu.memory_space<vmem>>, vector<2x128xf32>,
    } else {
    }
    return
  }
  func.func @transform_0(%arg0: i32, %arg1: i32, %arg2: i32) -> (i32, i32) {
    %c0_i32 = arith.constant 0 : i32
    return %arg0, %arg2 : i32, i32
  }
  func.func @transform_1(%arg0: i32, %arg1: i32, %arg2: i32) -> (i32, i32) {
    %c0_i32 = arith.constant 0 : i32
    return %arg2, %arg1 : i32, i32
  }
  func.func @transform_2(%arg0: i32, %arg1: i32, %arg2: i32) -> (i32, i32) {
    %c0_i32 = arith.constant 0 : i32
    %c0_i32_0 = arith.constant 0 : i32
    return %c0_i32, %arg1 : i32, i32
  }
  func.func @transform_3(%arg0: i32, %arg1: i32, %arg2: i32) -> (i32, i32) {
    %c0_i32 = arith.constant 0 : i32
    return %arg0, %arg1 : i32, i32
  }
}

</mosaic_0001>

<llo_original>
// kernel: tpu_custom_call.1
$region0: #{tpu_custom_call.1}
  #allocation0 [shape = 'u32[]', space=smem, size = 0x4, offset = 0x4, fixed_abs, tag = 'smem constant byte address 0x4 - core index']
  #allocation1 [shape = 'u32[144,128]{1,0:T(1,128)}', space=vmem, size = 0x12000, scoped, tag = 'internal scratch']
  #allocation2 [shape = 'f32[2,128]{1,0:T(2,128)}', space=vmem, size = 0x400, scoped, tag = 'scratch operand']
  %s0 = inlined_call_operand.hbm [shape: f32[2,4096], index: 0, kind: input, shape index: {}]
  %s1 = inlined_call_operand.hbm [shape: f32[4096,128], index: 1, kind: input, shape index: {}]
  %s2 = inlined_call_operand.hbm [shape: f32[1,128], index: 2, kind: input, shape index: {}]
  %s3 = inlined_call_operand.hbm [shape: f32[2,128], index: 3, kind: output, shape index: {}]
  %s4 = sld [smem:[#allocation0]]
  $region65: #{tpu_custom_call.1} parent=0
    _
  %s6 = ssub.s32 1, %s4
  %s7 = scalar_select 0, %s6, %s4
  $region1: #{tpu_custom_call.1} parent=0
    #allocation3 [shape = 'u8[32768]{0}', space=vmem, size = 0x8000, scoped, tag = 'input window, operand 0']
    #allocation4 [shape = 's32[2]{0}', space=sflag, size = 0x8, scoped, tag = 'scoped memory for tpu_custom_call.1']
    #allocation5 [shape = 's32[2]{0}', space=sflag, size = 0x8, scoped, tag = 'scoped memory for tpu_custom_call.1']
    #allocation6 [shape = 'u8[2097152]{0}', space=vmem, size = 0x200000, scoped, tag = 'input window, operand 1']
    #allocation7 [shape = 's32[2]{0}', space=sflag, size = 0x8, scoped, tag = 'scoped memory for tpu_custom_call.1']
    #allocation8 [shape = 'u8[512]{0}', space=vmem, size = 0x400, scoped, tag = 'input window, operand 2, single buffered']
    #allocation9 [shape = 'u8[1024]{0}', space=vmem, size = 0x400, scoped, tag = 'output window, operand 0, single buffered']
    %8 = vsyncpa [#allocation4], 0
    %s9 = scalar_lea.sflag [#allocation4], 1
    %10 = vsyncpa %s9, 0
    %11 = vsyncpa [#allocation7], 0
    %s12 = scalar_lea.sflag [#allocation7], 1
    %13 = vsyncpa %s12, 0
    %14 = vsyncpa [#allocation5], 0
    loop: start=0, step=1, limit=4
    $region2: #{tpu_custom_call.1} parent=1 // loop_pre_header
      _
    $region3: #{tpu_custom_call.1} parent=1 // loop_header
      %s16 = sphi 0, %s20
      %p17 = scmp.ge.s32.totalorder %s16, 4
      %s23 = sphi 0, %s42
      %s24 = sphi 0, %s38
      %s25 = sphi 0, %s34
      %s26 = sphi 0, %s23
      %s27 = sphi 0, %s24
      %s28 = sphi 0, %s25
      %s29 = sphi 0, %s26
      %s30 = sphi 0, %s27
      %s31 = sphi 0, %s28
      %s47 = sphi 0, %s49
      %s50 = sphi 0, %s47
      %s51 = sphi 0, %s50
      %s67 = sphi 0, %s51
      %s75 = sphi 0, %s77
      %s78 = sphi 0, %s75
      %s79 = sphi 0, %s78
      %s95 = sphi 0, %s79
      %s101 = sphi 0, %s103
      %s104 = sphi 0, %s101
      %s105 = sphi 0, %s104
      %s121 = sphi 0, %s105
      %s129 = sphi 0, %s131
      %s132 = sphi 0, %s129
      %s133 = sphi 0, %s132
      %s149 = sphi 0, %s133
    $region4: #{tpu_custom_call.1} parent=1 // loop_header_branch
      %19 = sbr.rel (%p17) target = $region8
    $region5: #{tpu_custom_call.1} parent=1 // loop_body
      %s21 = ssub.s32 %s16, 1
      %s22 = ssub.s32 %s16, 2
      %s32 = sadd.s32 1, %s25
      %p33 = scmp.ge.s32.totalorder %s32, 2
      %s34 = scalar_select %p33, 0, %s32
      %s35 = sadd.s32 1, %s24
      %s36 = scalar_select %p33, %s35, %s24
      %p37 = scmp.ge.s32.totalorder %s36, 1
      %s38 = scalar_select %p37, 0, %s36
      %s39 = sadd.s32 1, %s23
      %s40 = scalar_select %p37, %s39, %s23
      %p41 = scmp.ge.s32.totalorder %s40, 1
      %s42 = scalar_select %p41, 0, %s40
      %s43 = ssub.s32 %s23, %s42
      %s44 = ssub.s32 %s25, %s34
      %s45 = sor.u32 %s43, %s44
      %p46 = scmp.eq.s32.totalorder %s45, 0
      %s48 = sadd.s32 %s47, 1
      %s49 = scalar_select %p46, %s47, %s48
      %p52 = pneg %p46
      %p53 = scmp.eq.s32.totalorder %s16, 1
      %p54 = por %p52, %p53
      %p55 = scmp.ne.s32.totalorder %s47, %s50
      %p56 = scmp.eq.s32.totalorder %s16, 0
      %p57 = por %p55, %p56
      %p58 = scmp.ne.s32.totalorder %s47, %s50
      %p59 = scmp.eq.s32.totalorder %s21, 1
      %p60 = por %p58, %p59
      %p61 = scmp.ne.s32.totalorder %s50, %s51
      %p62 = scmp.eq.s32.totalorder %s21, 0
      %p63 = por %p61, %p62
      %p64 = scmp.ne.s32.totalorder %s50, %s51
      %p65 = scmp.eq.s32.totalorder %s22, 1
      %p66 = por %p64, %p65
      %p68 = scmp.ne.s32.totalorder %s51, %s67
      %p69 = scmp.eq.s32.totalorder %s22, 0
      %p70 = por %p68, %p69
      %s71 = ssub.s32 %s25, %s34
      %s72 = ssub.s32 %s24, %s38
      %s73 = sor.u32 %s71, %s72
      %p74 = scmp.eq.s32.totalorder %s73, 0
      %s76 = sadd.s32 %s75, 1
      %s77 = scalar_select %p74, %s75, %s76
      %p80 = pneg %p74
      %p81 = scmp.eq.s32.totalorder %s16, 1
      %p82 = por %p80, %p81
      %p83 = scmp.ne.s32.totalorder %s75, %s78
      %p84 = scmp.eq.s32.totalorder %s16, 0
      %p85 = por %p83, %p84
      %p86 = scmp.ne.s32.totalorder %s75, %s78
      %p87 = scmp.eq.s32.totalorder %s21, 1
      %p88 = por %p86, %p87
      %p89 = scmp.ne.s32.totalorder %s78, %s79
      %p90 = scmp.eq.s32.totalorder %s21, 0
      %p91 = por %p89, %p90
      %p92 = scmp.ne.s32.totalorder %s78, %s79
      %p93 = scmp.eq.s32.totalorder %s22, 1
      %p94 = por %p92, %p93
      %p96 = scmp.ne.s32.totalorder %s79, %s95
      %p97 = scmp.eq.s32.totalorder %s22, 0
      %p98 = por %p96, %p97
      %s99 = ssub.s32 %s24, %s38
      %p100 = scmp.eq.s32.totalorder %s99, 0
      %s102 = sadd.s32 %s101, 1
      %s103 = scalar_select %p100, %s101, %s102
      %p106 = pneg %p100
      %p107 = scmp.eq.s32.totalorder %s16, 1
      %p108 = por %p106, %p107
      %p109 = scmp.ne.s32.totalorder %s101, %s104
      %p110 = scmp.eq.s32.totalorder %s16, 0
      %p111 = por %p109, %p110
      %p112 = scmp.ne.s32.totalorder %s101, %s104
      %p113 = scmp.eq.s32.totalorder %s21, 1
      %p114 = por %p112, %p113
      %p115 = scmp.ne.s32.totalorder %s104, %s105
      %p116 = scmp.eq.s32.totalorder %s21, 0
      %p117 = por %p115, %p116
      %p118 = scmp.ne.s32.totalorder %s104, %s105
      %p119 = scmp.eq.s32.totalorder %s22, 1
      %p120 = por %p118, %p119
      %p122 = scmp.ne.s32.totalorder %s105, %s121
      %p123 = scmp.eq.s32.totalorder %s22, 0
      %p124 = por %p122, %p123
      %s125 = ssub.s32 %s23, %s42
      %s126 = ssub.s32 %s24, %s38
      %s127 = sor.u32 %s125, %s126
      %p128 = scmp.eq.s32.totalorder %s127, 0
      %s130 = sadd.s32 %s129, 1
      %s131 = scalar_select %p128, %s129, %s130
      %p134 = pneg %p128
      %p135 = scmp.eq.s32.totalorder %s16, 1
      %p136 = por %p134, %p135
      %p137 = scmp.ne.s32.totalorder %s129, %s132
      %p138 = scmp.eq.s32.totalorder %s16, 0
      %p139 = por %p137, %p138
      %p140 = scmp.ne.s32.totalorder %s129, %s132
      %p141 = scmp.eq.s32.totalorder %s21, 1
      %p142 = por %p140, %p141
      %p143 = scmp.ne.s32.totalorder %s132, %s133
      %p144 = scmp.eq.s32.totalorder %s21, 0
      %p145 = por %p143, %p144
      %p146 = scmp.ne.s32.totalorder %s132, %s133
      %p147 = scmp.eq.s32.totalorder %s22, 1
      %p148 = por %p146, %p147
      %p150 = scmp.ne.s32.totalorder %s133, %s149
      %p151 = scmp.eq.s32.totalorder %s22, 0
      %p152 = por %p150, %p151
      %p153 = scmp.le.s32.totalorder 1, %s16
      %p154 = scmp.lt.s32.totalorder %s16, 3
      %p155 = pnand %p153, %p154
      %p156 = pneg %p155
      // Predicated region
      $region9: #{tpu_custom_call.1} parent=5 // pred_check
        _
      $region10: #{tpu_custom_call.1} parent=5 // pred_check_branch
        %158 = sbr.rel (%p155) target = $region12
      $region11: #{tpu_custom_call.1} parent=5 // pred_region
        %s159 = ssub.s32 %s16, 1
        // Predicated region
        $region13: #{tpu_custom_call.1} parent=11 // pred_check
          %p160 = pneg %p117
        $region14: #{tpu_custom_call.1} parent=11 // pred_check_branch
          %162 = sbr.rel (%p160) target = $region16
        $region15: #{tpu_custom_call.1} parent=11 // pred_region
          %s164 = ssub.s32 16, 16
          %165 = vsyncadd [#allocation7], %s164
          %s166 = smul.addr %s27, 16
          %s167 = scalar_lea.hbm %s2, %s166
          %s169 = sshll.u32 [#allocation8], 4
          %s170 = int_to_ptr.vmem [resolvable:$true] %s169
          %172 = dma.hbm_to_vmem [thread:$0]  %s167, 16, %s170, [#allocation7]
        $region16: #{tpu_custom_call.1} parent=11 // pred_fallthru
          _
      $region12: #{tpu_custom_call.1} parent=5 // pred_fallthru
        _
      %p173 = scmp.lt.s32.totalorder %s16, 2
      // Predicated region
      $region17: #{tpu_custom_call.1} parent=5 // pred_check
        %p174 = pneg %p173
      $region18: #{tpu_custom_call.1} parent=5 // pred_check_branch
        %176 = sbr.rel (%p174) target = $region20
      $region19: #{tpu_custom_call.1} parent=5 // pred_region
        // Predicated region
        $region21: #{tpu_custom_call.1} parent=19 // pred_check
          %p177 = pneg %p57
        $region22: #{tpu_custom_call.1} parent=19 // pred_check_branch
          %179 = sbr.rel (%p177) target = $region24
        $region23: #{tpu_custom_call.1} parent=19 // pred_region
          %s180 = sand.u32 %s47, 1
          %s181 = scalar_lea.sflag [#allocation4], %s180
          %s182 = sand.u32 %s47, 1
          %s183 = smul.addr %s182, 32
          %s184 = scalar_lea.vmem [#allocation3], %s183
          %s185 = smul.u32 16, %s25
          %s187 = ssub.s32 512, 512
          %188 = vsyncadd %s181, %s187
          %s189 = smul.addr %s23, 32
          %s190 = sadd.s32 %s185, %s189
          %s191 = smul.addr %s190, 32
          %s192 = scalar_lea.hbm %s0, %s191
          %s194 = sshll.u32 %s184, 4
          %s195 = int_to_ptr.vmem [resolvable:$true] %s194
          %197 = dma.hbm_to_vmem [thread:$0]  %s192, 512, %s195, %s181
        $region24: #{tpu_custom_call.1} parent=19 // pred_fallthru
          _
        // Predicated region
        $region25: #{tpu_custom_call.1} parent=19 // pred_check
          %p198 = pneg %p85
        $region26: #{tpu_custom_call.1} parent=19 // pred_check_branch
          %200 = sbr.rel (%p198) target = $region28
        $region27: #{tpu_custom_call.1} parent=19 // pred_region
          %s201 = sand.u32 %s16, 1
          %s202 = scalar_lea.sflag [#allocation7], %s201
          %s203 = sand.u32 %s75, 1
          %s204 = smul.addr %s203, 2048
          %s205 = scalar_lea.vmem [#allocation6], %s204
          %s206 = smul.u32 256, %s25
          %s208 = ssub.s32 32768, 32768
          %209 = vsyncadd %s202, %s208
          %s210 = sadd.s32 %s24, %s206
          %s211 = smul.addr %s210, 128
          %s212 = scalar_lea.hbm %s1, %s211
          %s213 = sshll.u32 %s205, 4
          %s214 = int_to_ptr.vmem [resolvable:$true] %s213
          %219 = dma.hbm_to_vmem [thread:$0]  %s212, 32768, %s214, %s202, 128, 128, 8
        $region28: #{tpu_custom_call.1} parent=19 // pred_fallthru
          _
      $region20: #{tpu_custom_call.1} parent=5 // pred_fallthru
        _
      %p220 = scmp.le.s32.totalorder 1, %s16
      %p221 = scmp.lt.s32.totalorder %s16, 3
      %p222 = pnand %p220, %p221
      %p223 = pneg %p222
      // Predicated region
      $region29: #{tpu_custom_call.1} parent=5 // pred_check
        _
      $region30: #{tpu_custom_call.1} parent=5 // pred_check_branch
        %225 = sbr.rel (%p222) target = $region32
      $region31: #{tpu_custom_call.1} parent=5 // pred_region
        %s226 = ssub.s32 %s16, 1
        %s227 = sand.u32 %s50, 1
        %s228 = scalar_lea.sflag [#allocation4], %s227
        %s229 = sand.u32 %s50, 1
        %s230 = smul.addr %s229, 32
        %s231 = scalar_lea.vmem [#allocation3], %s230
        // Predicated region
        $region33: #{tpu_custom_call.1} parent=31 // pred_check
          %p232 = pneg %p63
        $region34: #{tpu_custom_call.1} parent=31 // pred_check_branch
          %234 = sbr.rel (%p232) target = $region36
        $region35: #{tpu_custom_call.1} parent=31 // pred_region
          %235 = dma.done %s228, 512
        $region36: #{tpu_custom_call.1} parent=31 // pred_fallthru
          _
        %s236 = sand.u32 %s21, 1
        %s237 = scalar_lea.sflag [#allocation7], %s236
        %s238 = sand.u32 %s78, 1
        %s239 = smul.addr %s238, 2048
        %s240 = scalar_lea.vmem [#allocation6], %s239
        // Predicated region
        $region37: #{tpu_custom_call.1} parent=31 // pred_check
          %p241 = pneg %p91
        $region38: #{tpu_custom_call.1} parent=31 // pred_check_branch
          %243 = sbr.rel (%p241) target = $region40
        $region39: #{tpu_custom_call.1} parent=31 // pred_region
          %244 = dma.done %s237, 32768
        $region40: #{tpu_custom_call.1} parent=31 // pred_fallthru
          _
        // Predicated region
        $region41: #{tpu_custom_call.1} parent=31 // pred_check
          %p245 = pneg %p117
        $region42: #{tpu_custom_call.1} parent=31 // pred_check_branch
          %247 = sbr.rel (%p245) target = $region44
        $region43: #{tpu_custom_call.1} parent=31 // pred_region
          %248 = dma.done [#allocation7], 16
        $region44: #{tpu_custom_call.1} parent=31 // pred_fallthru
          _
        %s249 = sand.u32 %s50, 1
        %s250 = scalar_lea.sflag [#allocation4], %s249
        %s251 = sand.u32 %s50, 1
        %s252 = smul.addr %s251, 32
        %s253 = scalar_lea.vmem [#allocation3], %s252
        %p254 = pneg %p63
        %p255 = pneg %p60
        %s256 = sand.u32 %s21, 1
        %s257 = scalar_lea.sflag [#allocation7], %s256
        %s258 = sand.u32 %s78, 1
        %s259 = smul.addr %s258, 2048
        %s260 = scalar_lea.vmem [#allocation6], %s259
        %p261 = pneg %p91
        %p262 = pneg %p88
        %p263 = pneg %p117
        %p264 = pneg %p114
        %p265 = pneg %p145
        %p266 = pneg %p142
        %s267 = smul.u32 16, %s28
        %s268 = smul.u32 256, %s28
        %p269 = scmp.eq.s32.totalorder %s28, 0
        // Predicated region
        $region45: #{tpu_custom_call.1} parent=31 // pred_check
          %p270 = pneg %p269
        $region46: #{tpu_custom_call.1} parent=31 // pred_check_branch
          %272 = sbr.rel (%p270) target = $region48
        $region47: #{tpu_custom_call.1} parent=31 // pred_region
          %273 = vst [vmem:[#allocation2] sm:$0x3] 0.0
        $region48: #{tpu_custom_call.1} parent=31 // pred_fallthru
          _
        %v274 = vld [vmem:[#allocation2] sm:$0x3]
        %v275 = vld [vmem:[%s231] sm:$0xff]
        %v276 = vld [vmem:[%s231 + $0x8] sm:$0xff]
        %v277 = vld [vmem:[%s231 + $0x10] sm:$0xff]
        %v278 = vld [vmem:[%s231 + $0x18] sm:$0xff]
        %v279 = vld [vmem:[%s240] sm:$0xff]
        %v280 = vld [vmem:[%s240 + $0x8] sm:$0xff]
        %v281 = vld [vmem:[%s240 + $0x10] sm:$0xff]
        %v282 = vld [vmem:[%s240 + $0x18] sm:$0xff]
        %v283 = vld [vmem:[%s240 + $0x20] sm:$0xff]
        %v284 = vld [vmem:[%s240 + $0x28] sm:$0xff]
        %v285 = vld [vmem:[%s240 + $0x30] sm:$0xff]
        %v286 = vld [vmem:[%s240 + $0x38] sm:$0xff]
        %v287 = vld [vmem:[%s240 + $0x40] sm:$0xff]
        %v288 = vld [vmem:[%s240 + $0x48] sm:$0xff]
        %v289 = vld [vmem:[%s240 + $0x50] sm:$0xff]
        %v290 = vld [vmem:[%s240 + $0x58] sm:$0xff]
        %v291 = vld [vmem:[%s240 + $0x60] sm:$0xff]
        %v292 = vld [vmem:[%s240 + $0x68] sm:$0xff]
        %v293 = vld [vmem:[%s240 + $0x70] sm:$0xff]
        %v294 = vld [vmem:[%s240 + $0x78] sm:$0xff]
        %v295 = vld [vmem:[%s240 + $0x80] sm:$0xff]
        %v296 = vld [vmem:[%s240 + $0x88] sm:$0xff]
        %v297 = vld [vmem:[%s240 + $0x90] sm:$0xff]
        %v298 = vld [vmem:[%s240 + $0x98] sm:$0xff]
        %v299 = vld [vmem:[%s240 + $0xa0] sm:$0xff]
        %v300 = vld [vmem:[%s240 + $0xa8] sm:$0xff]
        %v301 = vld [vmem:[%s240 + $0xb0] sm:$0xff]
        %v302 = vld [vmem:[%s240 + $0xb8] sm:$0xff]
        %v303 = vld [vmem:[%s240 + $0xc0] sm:$0xff]
        %v304 = vld [vmem:[%s240 + $0xc8] sm:$0xff]
        %v305 = vld [vmem:[%s240 + $0xd0] sm:$0xff]
        %v306 = vld [vmem:[%s240 + $0xd8] sm:$0xff]
        %v307 = vld [vmem:[%s240 + $0xe0] sm:$0xff]
        %v308 = vld [vmem:[%s240 + $0xe8] sm:$0xff]
        %v309 = vld [vmem:[%s240 + $0xf0] sm:$0xff]
        %v310 = vld [vmem:[%s240 + $0xf8] sm:$0xff]
        %v311 = vld [vmem:[%s240 + $0x100] sm:$0xff]
        %v312 = vld [vmem:[%s240 + $0x108] sm:$0xff]
        %v313 = vld [vmem:[%s240 + $0x110] sm:$0xff]
        %v314 = vld [vmem:[%s240 + $0x118] sm:$0xff]
        %v315 = vld [vmem:[%s240 + $0x120] sm:$0xff]
        %v316 = vld [vmem:[%s240 + $0x128] sm:$0xff]
        %v317 = vld [vmem:[%s240 + $0x130] sm:$0xff]
        %v318 = vld [vmem:[%s240 + $0x138] sm:$0xff]
        %v319 = vld [vmem:[%s240 + $0x140] sm:$0xff]
        %v320 = vld [vmem:[%s240 + $0x148] sm:$0xff]
        %v321 = vld [vmem:[%s240 + $0x150] sm:$0xff]
        %v322 = vld [vmem:[%s240 + $0x158] sm:$0xff]
        %v323 = vld [vmem:[%s240 + $0x160] sm:$0xff]
        %v324 = vld [vmem:[%s240 + $0x168] sm:$0xff]
        %v325 = vld [vmem:[%s240 + $0x170] sm:$0xff]
        %v326 = vld [vmem:[%s240 + $0x178] sm:$0xff]
        %v327 = vld [vmem:[%s240 + $0x180] sm:$0xff]
        %v328 = vld [vmem:[%s240 + $0x188] sm:$0xff]
        %v329 = vld [vmem:[%s240 + $0x190] sm:$0xff]
        %v330 = vld [vmem:[%s240 + $0x198] sm:$0xff]
        %v331 = vld [vmem:[%s240 + $0x1a0] sm:$0xff]
        %v332 = vld [vmem:[%s240 + $0x1a8] sm:$0xff]
        %v333 = vld [vmem:[%s240 + $0x1b0] sm:$0xff]
        %v334 = vld [vmem:[%s240 + $0x1b8] sm:$0xff]
        %v335 = vld [vmem:[%s240 + $0x1c0] sm:$0xff]
        %v336 = vld [vmem:[%s240 + $0x1c8] sm:$0xff]
        %v337 = vld [vmem:[%s240 + $0x1d0] sm:$0xff]
        %v338 = vld [vmem:[%s240 + $0x1d8] sm:$0xff]
        %v339 = vld [vmem:[%s240 + $0x1e0] sm:$0xff]
        %v340 = vld [vmem:[%s240 + $0x1e8] sm:$0xff]
        %v341 = vld [vmem:[%s240 + $0x1f0] sm:$0xff]
        %v342 = vld [vmem:[%s240 + $0x1f8] sm:$0xff]
        %v343 = vld [vmem:[%s240 + $0x200] sm:$0xff]
        %v344 = vld [vmem:[%s240 + $0x208] sm:$0xff]
        %v345 = vld [vmem:[%s240 + $0x210] sm:$0xff]
        %v346 = vld [vmem:[%s240 + $0x218] sm:$0xff]
        %v347 = vld [vmem:[%s240 + $0x220] sm:$0xff]
        %v348 = vld [vmem:[%s240 + $0x228] sm:$0xff]
        %v349 = vld [vmem:[%s240 + $0x230] sm:$0xff]
        %v350 = vld [vmem:[%s240 + $0x238] sm:$0xff]
        %v351 = vld [vmem:[%s240 + $0x240] sm:$0xff]
        %v352 = vld [vmem:[%s240 + $0x248] sm:$0xff]
        %v353 = vld [vmem:[%s240 + $0x250] sm:$0xff]
        %v354 = vld [vmem:[%s240 + $0x258] sm:$0xff]
        %v355 = vld [vmem:[%s240 + $0x260] sm:$0xff]
        %v356 = vld [vmem:[%s240 + $0x268] sm:$0xff]
        %v357 = vld [vmem:[%s240 + $0x270] sm:$0xff]
        %v358 = vld [vmem:[%s240 + $0x278] sm:$0xff]
        %v359 = vld [vmem:[%s240 + $0x280] sm:$0xff]
        %v360 = vld [vmem:[%s240 + $0x288] sm:$0xff]
        %v361 = vld [vmem:[%s240 + $0x290] sm:$0xff]
        %v362 = vld [vmem:[%s240 + $0x298] sm:$0xff]
        %v363 = vld [vmem:[%s240 + $0x2a0] sm:$0xff]
        %v364 = vld [vmem:[%s240 + $0x2a8] sm:$0xff]
        %v365 = vld [vmem:[%s240 + $0x2b0] sm:$0xff]
        %v366 = vld [vmem:[%s240 + $0x2b8] sm:$0xff]
        %v367 = vld [vmem:[%s240 + $0x2c0] sm:$0xff]
        %v368 = vld [vmem:[%s240 + $0x2c8] sm:$0xff]
        %v369 = vld [vmem:[%s240 + $0x2d0] sm:$0xff]
        %v370 = vld [vmem:[%s240 + $0x2d8] sm:$0xff]
        %v371 = vld [vmem:[%s240 + $0x2e0] sm:$0xff]
        %v372 = vld [vmem:[%s240 + $0x2e8] sm:$0xff]
        %v373 = vld [vmem:[%s240 + $0x2f0] sm:$0xff]
        %v374 = vld [vmem:[%s240 + $0x2f8] sm:$0xff]
        %v375 = vld [vmem:[%s240 + $0x300] sm:$0xff]
        %v376 = vld [vmem:[%s240 + $0x308] sm:$0xff]
        %v377 = vld [vmem:[%s240 + $0x310] sm:$0xff]
        %v378 = vld [vmem:[%s240 + $0x318] sm:$0xff]
        %v379 = vld [vmem:[%s240 + $0x320] sm:$0xff]
        %v380 = vld [vmem:[%s240 + $0x328] sm:$0xff]
        %v381 = vld [vmem:[%s240 + $0x330] sm:$0xff]
        %v382 = vld [vmem:[%s240 + $0x338] sm:$0xff]
        %v383 = vld [vmem:[%s240 + $0x340] sm:$0xff]
        %v384 = vld [vmem:[%s240 + $0x348] sm:$0xff]
        %v385 = vld [vmem:[%s240 + $0x350] sm:$0xff]
        %v386 = vld [vmem:[%s240 + $0x358] sm:$0xff]
        %v387 = vld [vmem:[%s240 + $0x360] sm:$0xff]
        %v388 = vld [vmem:[%s240 + $0x368] sm:$0xff]
        %v389 = vld [vmem:[%s240 + $0x370] sm:$0xff]
        %v390 = vld [vmem:[%s240 + $0x378] sm:$0xff]
        %v391 = vld [vmem:[%s240 + $0x380] sm:$0xff]
        %v392 = vld [vmem:[%s240 + $0x388] sm:$0xff]
        %v393 = vld [vmem:[%s240 + $0x390] sm:$0xff]
        %v394 = vld [vmem:[%s240 + $0x398] sm:$0xff]
        %v395 = vld [vmem:[%s240 + $0x3a0] sm:$0xff]
        %v396 = vld [vmem:[%s240 + $0x3a8] sm:$0xff]
        %v397 = vld [vmem:[%s240 + $0x3b0] sm:$0xff]
        %v398 = vld [vmem:[%s240 + $0x3b8] sm:$0xff]
        %v399 = vld [vmem:[%s240 + $0x3c0] sm:$0xff]
        %v400 = vld [vmem:[%s240 + $0x3c8] sm:$0xff]
        %v401 = vld [vmem:[%s240 + $0x3d0] sm:$0xff]
        %v402 = vld [vmem:[%s240 + $0x3d8] sm:$0xff]
        %v403 = vld [vmem:[%s240 + $0x3e0] sm:$0xff]
        %v404 = vld [vmem:[%s240 + $0x3e8] sm:$0xff]
        %v405 = vld [vmem:[%s240 + $0x3f0] sm:$0xff]
        %v406 = vld [vmem:[%s240 + $0x3f8] sm:$0xff]
        %v407 = vld [vmem:[%s240 + $0x400] sm:$0xff]
        %v408 = vld [vmem:[%s240 + $0x408] sm:$0xff]
        %v409 = vld [vmem:[%s240 + $0x410] sm:$0xff]
        %v410 = vld [vmem:[%s240 + $0x418] sm:$0xff]
        %v411 = vld [vmem:[%s240 + $0x420] sm:$0xff]
        %v412 = vld [vmem:[%s240 + $0x428] sm:$0xff]
        %v413 = vld [vmem:[%s240 + $0x430] sm:$0xff]
        %v414 = vld [vmem:[%s240 + $0x438] sm:$0xff]
        %v415 = vld [vmem:[%s240 + $0x440] sm:$0xff]
        %v416 = vld [vmem:[%s240 + $0x448] sm:$0xff]
        %v417 = vld [vmem:[%s240 + $0x450] sm:$0xff]
        %v418 = vld [vmem:[%s240 + $0x458] sm:$0xff]
        %v419 = vld [vmem:[%s240 + $0x460] sm:$0xff]
        %v420 = vld [vmem:[%s240 + $0x468] sm:$0xff]
        %v421 = vld [vmem:[%s240 + $0x470] sm:$0xff]
        %v422 = vld [vmem:[%s240 + $0x478] sm:$0xff]
        %v423 = vld [vmem:[%s240 + $0x480] sm:$0xff]
        %v424 = vld [vmem:[%s240 + $0x488] sm:$0xff]
        %v425 = vld [vmem:[%s240 + $0x490] sm:$0xff]
        %v426 = vld [vmem:[%s240 + $0x498] sm:$0xff]
        %v427 = vld [vmem:[%s240 + $0x4a0] sm:$0xff]
        %v428 = vld [vmem:[%s240 + $0x4a8] sm:$0xff]
        %v429 = vld [vmem:[%s240 + $0x4b0] sm:$0xff]
        %v430 = vld [vmem:[%s240 + $0x4b8] sm:$0xff]
        %v431 = vld [vmem:[%s240 + $0x4c0] sm:$0xff]
        %v432 = vld [vmem:[%s240 + $0x4c8] sm:$0xff]
        %v433 = vld [vmem:[%s240 + $0x4d0] sm:$0xff]
        %v434 = vld [vmem:[%s240 + $0x4d8] sm:$0xff]
        %v435 = vld [vmem:[%s240 + $0x4e0] sm:$0xff]
        %v436 = vld [vmem:[%s240 + $0x4e8] sm:$0xff]
        %v437 = vld [vmem:[%s240 + $0x4f0] sm:$0xff]
        %v438 = vld [vmem:[%s240 + $0x4f8] sm:$0xff]
        %v439 = vld [vmem:[%s240 + $0x500] sm:$0xff]
        %v440 = vld [vmem:[%s240 + $0x508] sm:$0xff]
        %v441 = vld [vmem:[%s240 + $0x510] sm:$0xff]
        %v442 = vld [vmem:[%s240 + $0x518] sm:$0xff]
        %v443 = vld [vmem:[%s240 + $0x520] sm:$0xff]
        %v444 = vld [vmem:[%s240 + $0x528] sm:$0xff]
        %v445 = vld [vmem:[%s240 + $0x530] sm:$0xff]
        %v446 = vld [vmem:[%s240 + $0x538] sm:$0xff]
        %v447 = vld [vmem:[%s240 + $0x540] sm:$0xff]
        %v448 = vld [vmem:[%s240 + $0x548] sm:$0xff]
        %v449 = vld [vmem:[%s240 + $0x550] sm:$0xff]
        %v450 = vld [vmem:[%s240 + $0x558] sm:$0xff]
        %v451 = vld [vmem:[%s240 + $0x560] sm:$0xff]
        %v452 = vld [vmem:[%s240 + $0x568] sm:$0xff]
        %v453 = vld [vmem:[%s240 + $0x570] sm:$0xff]
        %v454 = vld [vmem:[%s240 + $0x578] sm:$0xff]
        %v455 = vld [vmem:[%s240 + $0x580] sm:$0xff]
        %v456 = vld [vmem:[%s240 + $0x588] sm:$0xff]
        %v457 = vld [vmem:[%s240 + $0x590] sm:$0xff]
        %v458 = vld [vmem:[%s240 + $0x598] sm:$0xff]
        %v459 = vld [vmem:[%s240 + $0x5a0] sm:$0xff]
        %v460 = vld [vmem:[%s240 + $0x5a8] sm:$0xff]
        %v461 = vld [vmem:[%s240 + $0x5b0] sm:$0xff]
        %v462 = vld [vmem:[%s240 + $0x5b8] sm:$0xff]
        %v463 = vld [vmem:[%s240 + $0x5c0] sm:$0xff]
        %v464 = vld [vmem:[%s240 + $0x5c8] sm:$0xff]
        %v465 = vld [vmem:[%s240 + $0x5d0] sm:$0xff]
        %v466 = vld [vmem:[%s240 + $0x5d8] sm:$0xff]
        %v467 = vld [vmem:[%s240 + $0x5e0] sm:$0xff]
        %v468 = vld [vmem:[%s240 + $0x5e8] sm:$0xff]
        %v469 = vld [vmem:[%s240 + $0x5f0] sm:$0xff]
        %v470 = vld [vmem:[%s240 + $0x5f8] sm:$0xff]
        %v471 = vld [vmem:[%s240 + $0x600] sm:$0xff]
        %v472 = vld [vmem:[%s240 + $0x608] sm:$0xff]
        %v473 = vld [vmem:[%s240 + $0x610] sm:$0xff]
        %v474 = vld [vmem:[%s240 + $0x618] sm:$0xff]
        %v475 = vld [vmem:[%s240 + $0x620] sm:$0xff]
        %v476 = vld [vmem:[%s240 + $0x628] sm:$0xff]
        %v477 = vld [vmem:[%s240 + $0x630] sm:$0xff]
        %v478 = vld [vmem:[%s240 + $0x638] sm:$0xff]
        %v479 = vld [vmem:[%s240 + $0x640] sm:$0xff]
        %v480 = vld [vmem:[%s240 + $0x648] sm:$0xff]
        %v481 = vld [vmem:[%s240 + $0x650] sm:$0xff]
        %v482 = vld [vmem:[%s240 + $0x658] sm:$0xff]
        %v483 = vld [vmem:[%s240 + $0x660] sm:$0xff]
        %v484 = vld [vmem:[%s240 + $0x668] sm:$0xff]
        %v485 = vld [vmem:[%s240 + $0x670] sm:$0xff]
        %v486 = vld [vmem:[%s240 + $0x678] sm:$0xff]
        %v487 = vld [vmem:[%s240 + $0x680] sm:$0xff]
        %v488 = vld [vmem:[%s240 + $0x688] sm:$0xff]
        %v489 = vld [vmem:[%s240 + $0x690] sm:$0xff]
        %v490 = vld [vmem:[%s240 + $0x698] sm:$0xff]
        %v491 = vld [vmem:[%s240 + $0x6a0] sm:$0xff]
        %v492 = vld [vmem:[%s240 + $0x6a8] sm:$0xff]
        %v493 = vld [vmem:[%s240 + $0x6b0] sm:$0xff]
        %v494 = vld [vmem:[%s240 + $0x6b8] sm:$0xff]
        %v495 = vld [vmem:[%s240 + $0x6c0] sm:$0xff]
        %v496 = vld [vmem:[%s240 + $0x6c8] sm:$0xff]
        %v497 = vld [vmem:[%s240 + $0x6d0] sm:$0xff]
        %v498 = vld [vmem:[%s240 + $0x6d8] sm:$0xff]
        %v499 = vld [vmem:[%s240 + $0x6e0] sm:$0xff]
        %v500 = vld [vmem:[%s240 + $0x6e8] sm:$0xff]
        %v501 = vld [vmem:[%s240 + $0x6f0] sm:$0xff]
        %v502 = vld [vmem:[%s240 + $0x6f8] sm:$0xff]
        %v503 = vld [vmem:[%s240 + $0x700] sm:$0xff]
        %v504 = vld [vmem:[%s240 + $0x708] sm:$0xff]
        %v505 = vld [vmem:[%s240 + $0x710] sm:$0xff]
        %v506 = vld [vmem:[%s240 + $0x718] sm:$0xff]
        %v507 = vld [vmem:[%s240 + $0x720] sm:$0xff]
        %v508 = vld [vmem:[%s240 + $0x728] sm:$0xff]
        %v509 = vld [vmem:[%s240 + $0x730] sm:$0xff]
        %v510 = vld [vmem:[%s240 + $0x738] sm:$0xff]
        %v511 = vld [vmem:[%s240 + $0x740] sm:$0xff]
        %v512 = vld [vmem:[%s240 + $0x748] sm:$0xff]
        %v513 = vld [vmem:[%s240 + $0x750] sm:$0xff]
        %v514 = vld [vmem:[%s240 + $0x758] sm:$0xff]
        %v515 = vld [vmem:[%s240 + $0x760] sm:$0xff]
        %v516 = vld [vmem:[%s240 + $0x768] sm:$0xff]
        %v517 = vld [vmem:[%s240 + $0x770] sm:$0xff]
        %v518 = vld [vmem:[%s240 + $0x778] sm:$0xff]
        %v519 = vld [vmem:[%s240 + $0x780] sm:$0xff]
        %v520 = vld [vmem:[%s240 + $0x788] sm:$0xff]
        %v521 = vld [vmem:[%s240 + $0x790] sm:$0xff]
        %v522 = vld [vmem:[%s240 + $0x798] sm:$0xff]
        %v523 = vld [vmem:[%s240 + $0x7a0] sm:$0xff]
        %v524 = vld [vmem:[%s240 + $0x7a8] sm:$0xff]
        %v525 = vld [vmem:[%s240 + $0x7b0] sm:$0xff]
        %v526 = vld [vmem:[%s240 + $0x7b8] sm:$0xff]
        %v527 = vld [vmem:[%s240 + $0x7c0] sm:$0xff]
        %v528 = vld [vmem:[%s240 + $0x7c8] sm:$0xff]
        %v529 = vld [vmem:[%s240 + $0x7d0] sm:$0xff]
        %v530 = vld [vmem:[%s240 + $0x7d8] sm:$0xff]
        %v531 = vld [vmem:[%s240 + $0x7e0] sm:$0xff]
        %v532 = vld [vmem:[%s240 + $0x7e8] sm:$0xff]
        %v533 = vld [vmem:[%s240 + $0x7f0] sm:$0xff]
        %v534 = vld [vmem:[%s240 + $0x7f8] sm:$0xff]
        %v539 = vcombine.high %v275, %v275
        %v541 = vunpack.c.l.s4 1983009808
        %v542 = vunpack.c.0.s8 %v541
        %v543 = vlaneseq
        %v544 = vshrl.u32 %v543, 7
        %v545 = vsub.s32 %v542, %v544
        %v546 = vrot.slane %v275, %v545
        %v548 = vunpack.c.l.s4 1983009808
        %v549 = vunpack.c.0.s8 %v548
        %v550 = vlaneseq
        %v551 = vshrl.u32 %v550, 7
        %v552 = vsub.s32 %v549, %v551
        %v553 = vrot.slane %v539, %v552
        %v554 = vcombine.high %v546, %v546
        %v555 = vcombine.high %v553, %v553
        %v556 = vcombine.high %v276, %v276
        %v558 = vunpack.c.l.s4 1983009808
        %v559 = vunpack.c.0.s8 %v558
        %v560 = vlaneseq
        %v561 = vshrl.u32 %v560, 7
        %v562 = vsub.s32 %v559, %v561
        %v563 = vrot.slane %v276, %v562
        %v565 = vunpack.c.l.s4 1983009808
        %v566 = vunpack.c.0.s8 %v565
        %v567 = vlaneseq
        %v568 = vshrl.u32 %v567, 7
        %v569 = vsub.s32 %v566, %v568
        %v570 = vrot.slane %v556, %v569
        %v571 = vcombine.high %v563, %v563
        %v572 = vcombine.high %v570, %v570
        %v573 = vcombine.high %v277, %v277
        %v575 = vunpack.c.l.s4 1983009808
        %v576 = vunpack.c.0.s8 %v575
        %v577 = vlaneseq
        %v578 = vshrl.u32 %v577, 7
        %v579 = vsub.s32 %v576, %v578
        %v580 = vrot.slane %v277, %v579
        %v582 = vunpack.c.l.s4 1983009808
        %v583 = vunpack.c.0.s8 %v582
        %v584 = vlaneseq
        %v585 = vshrl.u32 %v584, 7
        %v586 = vsub.s32 %v583, %v585
        %v587 = vrot.slane %v573, %v586
        %v588 = vcombine.high %v580, %v580
        %v589 = vcombine.high %v587, %v587
        %v590 = vcombine.high %v278, %v278
        %v592 = vunpack.c.l.s4 1983009808
        %v593 = vunpack.c.0.s8 %v592
        %v594 = vlaneseq
        %v595 = vshrl.u32 %v594, 7
        %v596 = vsub.s32 %v593, %v595
        %v597 = vrot.slane %v278, %v596
        %v599 = vunpack.c.l.s4 1983009808
        %v600 = vunpack.c.0.s8 %v599
        %v601 = vlaneseq
        %v602 = vshrl.u32 %v601, 7
        %v603 = vsub.s32 %v600, %v602
        %v604 = vrot.slane %v590, %v603
        %v605 = vcombine.high %v597, %v597
        %v606 = vcombine.high %v604, %v604
        %623 = vmatprep.subr.mxu0 0.0
        %624 = vmatpush1.msra.mxu0 %v279
        %625 = vmatprep.subr.mxu0 0.0
        %626 = vmatpush1.msra.mxu0 %v280
        %627 = vmatprep.subr.mxu0 0.0
        %628 = vmatpush1.msra.mxu0 %v281
        %629 = vmatprep.subr.mxu0 0.0
        %630 = vmatpush1.msra.mxu0 %v282
        %631 = vmatprep.subr.mxu0 0.0
        %632 = vmatpush1.msra.mxu0 %v283
        %633 = vmatprep.subr.mxu0 0.0
        %634 = vmatpush1.msra.mxu0 %v284
        %635 = vmatprep.subr.mxu0 0.0
        %636 = vmatpush1.msra.mxu0 %v285
        %637 = vmatprep.subr.mxu0 0.0
        %638 = vmatpush1.msra.mxu0 %v286
        %639 = vmatprep.subr.mxu0 0.0
        %640 = vmatpush1.msra.mxu0 %v287
        %641 = vmatprep.subr.mxu0 0.0
        %642 = vmatpush1.msra.mxu0 %v288
        %643 = vmatprep.subr.mxu0 0.0
        %644 = vmatpush1.msra.mxu0 %v289
        %645 = vmatprep.subr.mxu0 0.0
        %646 = vmatpush1.msra.mxu0 %v290
        %647 = vmatprep.subr.mxu0 0.0
        %648 = vmatpush1.msra.mxu0 %v291
        %649 = vmatprep.subr.mxu0 0.0
        %650 = vmatpush1.msra.mxu0 %v292
        %651 = vmatprep.subr.mxu0 0.0
        %652 = vmatpush1.msra.mxu0 %v293
        %653 = vmatprep.subr.mxu0 0.0
        %654 = vmatpush1.msra.mxu0 %v294
        %655 = vmatprep.subr.mxu0 0.0
        %656 = vmatpush1.msra.mxu0 %v295
        %657 = vmatprep.subr.mxu0 0.0
        %658 = vmatpush1.msra.mxu0 %v296
        %659 = vmatprep.subr.mxu0 0.0
        %660 = vmatpush1.msra.mxu0 %v297
        %661 = vmatprep.subr.mxu0 0.0
        %662 = vmatpush1.msra.mxu0 %v298
        %663 = vmatprep.subr.mxu0 0.0
        %664 = vmatpush1.msra.mxu0 %v299
        %665 = vmatprep.subr.mxu0 0.0
        %666 = vmatpush1.msra.mxu0 %v300
        %667 = vmatprep.subr.mxu0 0.0
        %668 = vmatpush1.msra.mxu0 %v301
        %669 = vmatprep.subr.mxu0 0.0
        %670 = vmatpush1.msra.mxu0 %v302
        %671 = vmatprep.subr.mxu0 0.0
        %672 = vmatpush1.msra.mxu0 %v303
        %673 = vmatprep.subr.mxu0 0.0
        %674 = vmatpush1.msra.mxu0 %v304
        %675 = vmatprep.subr.mxu0 0.0
        %676 = vmatpush1.msra.mxu0 %v305
        %677 = vmatprep.subr.mxu0 0.0
        %678 = vmatpush1.msra.mxu0 %v306
        %679 = vmatprep.subr.mxu0 0.0
        %680 = vmatpush1.msra.mxu0 %v307
        %681 = vmatprep.subr.mxu0 0.0
        %682 = vmatpush1.msra.mxu0 %v308
        %683 = vmatprep.subr.mxu0 0.0
        %684 = vmatpush1.msra.mxu0 %v309
        %685 = vmatprep.subr.mxu0 0.0
        %686 = vmatpush1.msra.mxu0 %v310
        %687 = vmatprep.mubr.f32.mxu0 %v554
        %688 = vmatmul.mubr.f32.gmra.mrb[0].mxu0 %v546
        %v689 = vpop.f32.mrb[0].mxu0
        %v690 = vadd.f32 0.0, %v689
        %v691 = vpop.f32.mrb[0].mxu0
        %692 = vdwg.mxu0
        %693 = vmatprep.subr.mxu0 0.0
        %694 = vmatpush1.msra.mxu0 %v311
        %695 = vmatprep.subr.mxu0 0.0
        %696 = vmatpush1.msra.mxu0 %v312
        %697 = vmatprep.subr.mxu0 0.0
        %698 = vmatpush1.msra.mxu0 %v313
        %699 = vmatprep.subr.mxu0 0.0
        %700 = vmatpush1.msra.mxu0 %v314
        %701 = vmatprep.subr.mxu0 0.0
        %702 = vmatpush1.msra.mxu0 %v315
        %703 = vmatprep.subr.mxu0 0.0
        %704 = vmatpush1.msra.mxu0 %v316
        %705 = vmatprep.subr.mxu0 0.0
        %706 = vmatpush1.msra.mxu0 %v317
        %707 = vmatprep.subr.mxu0 0.0
        %708 = vmatpush1.msra.mxu0 %v318
        %709 = vmatprep.subr.mxu0 0.0
        %710 = vmatpush1.msra.mxu0 %v319
        %711 = vmatprep.subr.mxu0 0.0
        %712 = vmatpush1.msra.mxu0 %v320
        %713 = vmatprep.subr.mxu0 0.0
        %714 = vmatpush1.msra.mxu0 %v321
        %715 = vmatprep.subr.mxu0 0.0
        %716 = vmatpush1.msra.mxu0 %v322
        %717 = vmatprep.subr.mxu0 0.0
        %718 = vmatpush1.msra.mxu0 %v323
        %719 = vmatprep.subr.mxu0 0.0
        %720 = vmatpush1.msra.mxu0 %v324
        %721 = vmatprep.subr.mxu0 0.0
        %722 = vmatpush1.msra.mxu0 %v325
        %723 = vmatprep.subr.mxu0 0.0
        %724 = vmatpush1.msra.mxu0 %v326
        %725 = vmatprep.subr.mxu0 0.0
        %726 = vmatpush1.msra.mxu0 %v327
        %727 = vmatprep.subr.mxu0 0.0
        %728 = vmatpush1.msra.mxu0 %v328
        %729 = vmatprep.subr.mxu0 0.0
        %730 = vmatpush1.msra.mxu0 %v329
        %731 = vmatprep.subr.mxu0 0.0
        %732 = vmatpush1.msra.mxu0 %v330
        %733 = vmatprep.subr.mxu0 0.0
        %734 = vmatpush1.msra.mxu0 %v331
        %735 = vmatprep.subr.mxu0 0.0
        %736 = vmatpush1.msra.mxu0 %v332
        %737 = vmatprep.subr.mxu0 0.0
        %738 = vmatpush1.msra.mxu0 %v333
        %739 = vmatprep.subr.mxu0 0.0
        %740 = vmatpush1.msra.mxu0 %v334
        %741 = vmatprep.subr.mxu0 0.0
        %742 = vmatpush1.msra.mxu0 %v335
        %743 = vmatprep.subr.mxu0 0.0
        %744 = vmatpush1.msra.mxu0 %v336
        %745 = vmatprep.subr.mxu0 0.0
        %746 = vmatpush1.msra.mxu0 %v337
        %747 = vmatprep.subr.mxu0 0.0
        %748 = vmatpush1.msra.mxu0 %v338
        %749 = vmatprep.subr.mxu0 0.0
        %750 = vmatpush1.msra.mxu0 %v339
        %751 = vmatprep.subr.mxu0 0.0
        %752 = vmatpush1.msra.mxu0 %v340
        %753 = vmatprep.subr.mxu0 0.0
        %754 = vmatpush1.msra.mxu0 %v341
        %755 = vmatprep.subr.mxu0 0.0
        %756 = vmatpush1.msra.mxu0 %v342
        %757 = vmatprep.mubr.f32.mxu0 %v555
        %758 = vmatmul.mubr.f32.gmra.mrb[0].mxu0 %v553
        %v759 = vpop.f32.mrb[0].mxu0
        %v760 = vadd.f32 %v690, %v759
        %v761 = vpop.f32.mrb[0].mxu0
        %762 = vdwg.mxu0
        %763 = vmatprep.subr.mxu0 0.0
        %764 = vmatpush1.msra.mxu0 %v343
        %765 = vmatprep.subr.mxu0 0.0
        %766 = vmatpush1.msra.mxu0 %v344
        %767 = vmatprep.subr.mxu0 0.0
        %768 = vmatpush1.msra.mxu0 %v345
        %769 = vmatprep.subr.mxu0 0.0
        %770 = vmatpush1.msra.mxu0 %v346
        %771 = vmatprep.subr.mxu0 0.0
        %772 = vmatpush1.msra.mxu0 %v347
        %773 = vmatprep.subr.mxu0 0.0
        %774 = vmatpush1.msra.mxu0 %v348
        %775 = vmatprep.subr.mxu0 0.0
        %776 = vmatpush1.msra.mxu0 %v349
        %777 = vmatprep.subr.mxu0 0.0
        %778 = vmatpush1.msra.mxu0 %v350
        %779 = vmatprep.subr.mxu0 0.0
        %780 = vmatpush1.msra.mxu0 %v351
        %781 = vmatprep.subr.mxu0 0.0
        %782 = vmatpush1.msra.mxu0 %v352
        %783 = vmatprep.subr.mxu0 0.0
        %784 = vmatpush1.msra.mxu0 %v353
        %785 = vmatprep.subr.mxu0 0.0
        %786 = vmatpush1.msra.mxu0 %v354
        %787 = vmatprep.subr.mxu0 0.0
        %788 = vmatpush1.msra.mxu0 %v355
        %789 = vmatprep.subr.mxu0 0.0
        %790 = vmatpush1.msra.mxu0 %v356
        %791 = vmatprep.subr.mxu0 0.0
        %792 = vmatpush1.msra.mxu0 %v357
        %793 = vmatprep.subr.mxu0 0.0
        %794 = vmatpush1.msra.mxu0 %v358
        %795 = vmatprep.subr.mxu0 0.0
        %796 = vmatpush1.msra.mxu0 %v359
        %797 = vmatprep.subr.mxu0 0.0
        %798 = vmatpush1.msra.mxu0 %v360
        %799 = vmatprep.subr.mxu0 0.0
        %800 = vmatpush1.msra.mxu0 %v361
        %801 = vmatprep.subr.mxu0 0.0
        %802 = vmatpush1.msra.mxu0 %v362
        %803 = vmatprep.subr.mxu0 0.0
        %804 = vmatpush1.msra.mxu0 %v363
        %805 = vmatprep.subr.mxu0 0.0
        %806 = vmatpush1.msra.mxu0 %v364
        %807 = vmatprep.subr.mxu0 0.0
        %808 = vmatpush1.msra.mxu0 %v365
        %809 = vmatprep.subr.mxu0 0.0
        %810 = vmatpush1.msra.mxu0 %v366
        %811 = vmatprep.subr.mxu0 0.0
        %812 = vmatpush1.msra.mxu0 %v367
        %813 = vmatprep.subr.mxu0 0.0
        %814 = vmatpush1.msra.mxu0 %v368
        %815 = vmatprep.subr.mxu0 0.0
        %816 = vmatpush1.msra.mxu0 %v369
        %817 = vmatprep.subr.mxu0 0.0
        %818 = vmatpush1.msra.mxu0 %v370
        %819 = vmatprep.subr.mxu0 0.0
        %820 = vmatpush1.msra.mxu0 %v371
        %821 = vmatprep.subr.mxu0 0.0
        %822 = vmatpush1.msra.mxu0 %v372
        %823 = vmatprep.subr.mxu0 0.0
        %824 = vmatpush1.msra.mxu0 %v373
        %825 = vmatprep.subr.mxu0 0.0
        %826 = vmatpush1.msra.mxu0 %v374
        %827 = vmatprep.mubr.f32.mxu0 %v571
        %828 = vmatmul.mubr.f32.gmra.mrb[0].mxu0 %v563
        %v829 = vpop.f32.mrb[0].mxu0
        %v830 = vadd.f32 %v760, %v829
        %v831 = vpop.f32.mrb[0].mxu0
        %832 = vdwg.mxu0
        %833 = vmatprep.subr.mxu0 0.0
        %834 = vmatpush1.msra.mxu0 %v375
        %835 = vmatprep.subr.mxu0 0.0
        %836 = vmatpush1.msra.mxu0 %v376
        %837 = vmatprep.subr.mxu0 0.0
        %838 = vmatpush1.msra.mxu0 %v377
        %839 = vmatprep.subr.mxu0 0.0
        %840 = vmatpush1.msra.mxu0 %v378
        %841 = vmatprep.subr.mxu0 0.0
        %842 = vmatpush1.msra.mxu0 %v379
        %843 = vmatprep.subr.mxu0 0.0
        %844 = vmatpush1.msra.mxu0 %v380
        %845 = vmatprep.subr.mxu0 0.0
        %846 = vmatpush1.msra.mxu0 %v381
        %847 = vmatprep.subr.mxu0 0.0
        %848 = vmatpush1.msra.mxu0 %v382
        %849 = vmatprep.subr.mxu0 0.0
        %850 = vmatpush1.msra.mxu0 %v383
        %851 = vmatprep.subr.mxu0 0.0
        %852 = vmatpush1.msra.mxu0 %v384
        %853 = vmatprep.subr.mxu0 0.0
        %854 = vmatpush1.msra.mxu0 %v385
        %855 = vmatprep.subr.mxu0 0.0
        %856 = vmatpush1.msra.mxu0 %v386
        %857 = vmatprep.subr.mxu0 0.0
        %858 = vmatpush1.msra.mxu0 %v387
        %859 = vmatprep.subr.mxu0 0.0
        %860 = vmatpush1.msra.mxu0 %v388
        %861 = vmatprep.subr.mxu0 0.0
        %862 = vmatpush1.msra.mxu0 %v389
        %863 = vmatprep.subr.mxu0 0.0
        %864 = vmatpush1.msra.mxu0 %v390
        %865 = vmatprep.subr.mxu0 0.0
        %866 = vmatpush1.msra.mxu0 %v391
        %867 = vmatprep.subr.mxu0 0.0
        %868 = vmatpush1.msra.mxu0 %v392
        %869 = vmatprep.subr.mxu0 0.0
        %870 = vmatpush1.msra.mxu0 %v393
        %871 = vmatprep.subr.mxu0 0.0
        %872 = vmatpush1.msra.mxu0 %v394
        %873 = vmatprep.subr.mxu0 0.0
        %874 = vmatpush1.msra.mxu0 %v395
        %875 = vmatprep.subr.mxu0 0.0
        %876 = vmatpush1.msra.mxu0 %v396
        %877 = vmatprep.subr.mxu0 0.0
        %878 = vmatpush1.msra.mxu0 %v397
        %879 = vmatprep.subr.mxu0 0.0
        %880 = vmatpush1.msra.mxu0 %v398
        %881 = vmatprep.subr.mxu0 0.0
        %882 = vmatpush1.msra.mxu0 %v399
        %883 = vmatprep.subr.mxu0 0.0
        %884 = vmatpush1.msra.mxu0 %v400
        %885 = vmatprep.subr.mxu0 0.0
        %886 = vmatpush1.msra.mxu0 %v401
        %887 = vmatprep.subr.mxu0 0.0
        %888 = vmatpush1.msra.mxu0 %v402
        %889 = vmatprep.subr.mxu0 0.0
        %890 = vmatpush1.msra.mxu0 %v403
        %891 = vmatprep.subr.mxu0 0.0
        %892 = vmatpush1.msra.mxu0 %v404
        %893 = vmatprep.subr.mxu0 0.0
        %894 = vmatpush1.msra.mxu0 %v405
        %895 = vmatprep.subr.mxu0 0.0
        %896 = vmatpush1.msra.mxu0 %v406
        %897 = vmatprep.mubr.f32.mxu0 %v572
        %898 = vmatmul.mubr.f32.gmra.mrb[0].mxu0 %v570
        %v899 = vpop.f32.mrb[0].mxu0
        %v900 = vadd.f32 %v830, %v899
        %v901 = vpop.f32.mrb[0].mxu0
        %902 = vdwg.mxu0
        %903 = vmatprep.subr.mxu0 0.0
        %904 = vmatpush1.msra.mxu0 %v407
        %905 = vmatprep.subr.mxu0 0.0
        %906 = vmatpush1.msra.mxu0 %v408
        %907 = vmatprep.subr.mxu0 0.0
        %908 = vmatpush1.msra.mxu0 %v409
        %909 = vmatprep.subr.mxu0 0.0
        %910 = vmatpush1.msra.mxu0 %v410
        %911 = vmatprep.subr.mxu0 0.0
        %912 = vmatpush1.msra.mxu0 %v411
        %913 = vmatprep.subr.mxu0 0.0
        %914 = vmatpush1.msra.mxu0 %v412
        %915 = vmatprep.subr.mxu0 0.0
        %916 = vmatpush1.msra.mxu0 %v413
        %917 = vmatprep.subr.mxu0 0.0
        %918 = vmatpush1.msra.mxu0 %v414
        %919 = vmatprep.subr.mxu0 0.0
        %920 = vmatpush1.msra.mxu0 %v415
        %921 = vmatprep.subr.mxu0 0.0
        %922 = vmatpush1.msra.mxu0 %v416
        %923 = vmatprep.subr.mxu0 0.0
        %924 = vmatpush1.msra.mxu0 %v417
        %925 = vmatprep.subr.mxu0 0.0
        %926 = vmatpush1.msra.mxu0 %v418
        %927 = vmatprep.subr.mxu0 0.0
        %928 = vmatpush1.msra.mxu0 %v419
        %929 = vmatprep.subr.mxu0 0.0
        %930 = vmatpush1.msra.mxu0 %v420
        %931 = vmatprep.subr.mxu0 0.0
        %932 = vmatpush1.msra.mxu0 %v421
        %933 = vmatprep.subr.mxu0 0.0
        %934 = vmatpush1.msra.mxu0 %v422
        %935 = vmatprep.subr.mxu0 0.0
        %936 = vmatpush1.msra.mxu0 %v423
        %937 = vmatprep.subr.mxu0 0.0
        %938 = vmatpush1.msra.mxu0 %v424
        %939 = vmatprep.subr.mxu0 0.0
        %940 = vmatpush1.msra.mxu0 %v425
        %941 = vmatprep.subr.mxu0 0.0
        %942 = vmatpush1.msra.mxu0 %v426
        %943 = vmatprep.subr.mxu0 0.0
        %944 = vmatpush1.msra.mxu0 %v427
        %945 = vmatprep.subr.mxu0 0.0
        %946 = vmatpush1.msra.mxu0 %v428
        %947 = vmatprep.subr.mxu0 0.0
        %948 = vmatpush1.msra.mxu0 %v429
        %949 = vmatprep.subr.mxu0 0.0
        %950 = vmatpush1.msra.mxu0 %v430
        %951 = vmatprep.subr.mxu0 0.0
        %952 = vmatpush1.msra.mxu0 %v431
        %953 = vmatprep.subr.mxu0 0.0
        %954 = vmatpush1.msra.mxu0 %v432
        %955 = vmatprep.subr.mxu0 0.0
        %956 = vmatpush1.msra.mxu0 %v433
        %957 = vmatprep.subr.mxu0 0.0
        %958 = vmatpush1.msra.mxu0 %v434
        %959 = vmatprep.subr.mxu0 0.0
        %960 = vmatpush1.msra.mxu0 %v435
        %961 = vmatprep.subr.mxu0 0.0
        %962 = vmatpush1.msra.mxu0 %v436
        %963 = vmatprep.subr.mxu0 0.0
        %964 = vmatpush1.msra.mxu0 %v437
        %965 = vmatprep.subr.mxu0 0.0
        %966 = vmatpush1.msra.mxu0 %v438
        %967 = vmatprep.mubr.f32.mxu0 %v588
        %968 = vmatmul.mubr.f32.gmra.mrb[0].mxu0 %v580
        %v969 = vpop.f32.mrb[0].mxu0
        %v970 = vadd.f32 %v900, %v969
        %v971 = vpop.f32.mrb[0].mxu0
        %972 = vdwg.mxu0
        %973 = vmatprep.subr.mxu0 0.0
        %974 = vmatpush1.msra.mxu0 %v439
        %975 = vmatprep.subr.mxu0 0.0
        %976 = vmatpush1.msra.mxu0 %v440
        %977 = vmatprep.subr.mxu0 0.0
        %978 = vmatpush1.msra.mxu0 %v441
        %979 = vmatprep.subr.mxu0 0.0
        %980 = vmatpush1.msra.mxu0 %v442
        %981 = vmatprep.subr.mxu0 0.0
        %982 = vmatpush1.msra.mxu0 %v443
        %983 = vmatprep.subr.mxu0 0.0
        %984 = vmatpush1.msra.mxu0 %v444
        %985 = vmatprep.subr.mxu0 0.0
        %986 = vmatpush1.msra.mxu0 %v445
        %987 = vmatprep.subr.mxu0 0.0
        %988 = vmatpush1.msra.mxu0 %v446
        %989 = vmatprep.subr.mxu0 0.0
        %990 = vmatpush1.msra.mxu0 %v447
        %991 = vmatprep.subr.mxu0 0.0
        %992 = vmatpush1.msra.mxu0 %v448
        %993 = vmatprep.subr.mxu0 0.0
        %994 = vmatpush1.msra.mxu0 %v449
        %995 = vmatprep.subr.mxu0 0.0
        %996 = vmatpush1.msra.mxu0 %v450
        %997 = vmatprep.subr.mxu0 0.0
        %998 = vmatpush1.msra.mxu0 %v451
        %999 = vmatprep.subr.mxu0 0.0
        %1000 = vmatpush1.msra.mxu0 %v452
        %1001 = vmatprep.subr.mxu0 0.0
        %1002 = vmatpush1.msra.mxu0 %v453
        %1003 = vmatprep.subr.mxu0 0.0
        %1004 = vmatpush1.msra.mxu0 %v454
        %1005 = vmatprep.subr.mxu0 0.0
        %1006 = vmatpush1.msra.mxu0 %v455
        %1007 = vmatprep.subr.mxu0 0.0
        %1008 = vmatpush1.msra.mxu0 %v456
        %1009 = vmatprep.subr.mxu0 0.0
        %1010 = vmatpush1.msra.mxu0 %v457
        %1011 = vmatprep.subr.mxu0 0.0
        %1012 = vmatpush1.msra.mxu0 %v458
        %1013 = vmatprep.subr.mxu0 0.0
        %1014 = vmatpush1.msra.mxu0 %v459
        %1015 = vmatprep.subr.mxu0 0.0
        %1016 = vmatpush1.msra.mxu0 %v460
        %1017 = vmatprep.subr.mxu0 0.0
        %1018 = vmatpush1.msra.mxu0 %v461
        %1019 = vmatprep.subr.mxu0 0.0
        %1020 = vmatpush1.msra.mxu0 %v462
        %1021 = vmatprep.subr.mxu0 0.0
        %1022 = vmatpush1.msra.mxu0 %v463
        %1023 = vmatprep.subr.mxu0 0.0
        %1024 = vmatpush1.msra.mxu0 %v464
        %1025 = vmatprep.subr.mxu0 0.0
        %1026 = vmatpush1.msra.mxu0 %v465
        %1027 = vmatprep.subr.mxu0 0.0
        %1028 = vmatpush1.msra.mxu0 %v466
        %1029 = vmatprep.subr.mxu0 0.0
        %1030 = vmatpush1.msra.mxu0 %v467
        %1031 = vmatprep.subr.mxu0 0.0
        %1032 = vmatpush1.msra.mxu0 %v468
        %1033 = vmatprep.subr.mxu0 0.0
        %1034 = vmatpush1.msra.mxu0 %v469
        %1035 = vmatprep.subr.mxu0 0.0
        %1036 = vmatpush1.msra.mxu0 %v470
        %1037 = vmatprep.mubr.f32.mxu0 %v589
        %1038 = vmatmul.mubr.f32.gmra.mrb[0].mxu0 %v587
        %v1039 = vpop.f32.mrb[0].mxu0
        %v1040 = vadd.f32 %v970, %v1039
        %v1041 = vpop.f32.mrb[0].mxu0
        %1042 = vdwg.mxu0
        %1043 = vmatprep.subr.mxu0 0.0
        %1044 = vmatpush1.msra.mxu0 %v471
        %1045 = vmatprep.subr.mxu0 0.0
        %1046 = vmatpush1.msra.mxu0 %v472
        %1047 = vmatprep.subr.mxu0 0.0
        %1048 = vmatpush1.msra.mxu0 %v473
        %1049 = vmatprep.subr.mxu0 0.0
        %1050 = vmatpush1.msra.mxu0 %v474
        %1051 = vmatprep.subr.mxu0 0.0
        %1052 = vmatpush1.msra.mxu0 %v475
        %1053 = vmatprep.subr.mxu0 0.0
        %1054 = vmatpush1.msra.mxu0 %v476
        %1055 = vmatprep.subr.mxu0 0.0
        %1056 = vmatpush1.msra.mxu0 %v477
        %1057 = vmatprep.subr.mxu0 0.0
        %1058 = vmatpush1.msra.mxu0 %v478
        %1059 = vmatprep.subr.mxu0 0.0
        %1060 = vmatpush1.msra.mxu0 %v479
        %1061 = vmatprep.subr.mxu0 0.0
        %1062 = vmatpush1.msra.mxu0 %v480
        %1063 = vmatprep.subr.mxu0 0.0
        %1064 = vmatpush1.msra.mxu0 %v481
        %1065 = vmatprep.subr.mxu0 0.0
        %1066 = vmatpush1.msra.mxu0 %v482
        %1067 = vmatprep.subr.mxu0 0.0
        %1068 = vmatpush1.msra.mxu0 %v483
        %1069 = vmatprep.subr.mxu0 0.0
        %1070 = vmatpush1.msra.mxu0 %v484
        %1071 = vmatprep.subr.mxu0 0.0
        %1072 = vmatpush1.msra.mxu0 %v485
        %1073 = vmatprep.subr.mxu0 0.0
        %1074 = vmatpush1.msra.mxu0 %v486
        %1075 = vmatprep.subr.mxu0 0.0
        %1076 = vmatpush1.msra.mxu0 %v487
        %1077 = vmatprep.subr.mxu0 0.0
        %1078 = vmatpush1.msra.mxu0 %v488
        %1079 = vmatprep.subr.mxu0 0.0
        %1080 = vmatpush1.msra.mxu0 %v489
        %1081 = vmatprep.subr.mxu0 0.0
        %1082 = vmatpush1.msra.mxu0 %v490
        %1083 = vmatprep.subr.mxu0 0.0
        %1084 = vmatpush1.msra.mxu0 %v491
        %1085 = vmatprep.subr.mxu0 0.0
        %1086 = vmatpush1.msra.mxu0 %v492
        %1087 = vmatprep.subr.mxu0 0.0
        %1088 = vmatpush1.msra.mxu0 %v493
        %1089 = vmatprep.subr.mxu0 0.0
        %1090 = vmatpush1.msra.mxu0 %v494
        %1091 = vmatprep.subr.mxu0 0.0
        %1092 = vmatpush1.msra.mxu0 %v495
        %1093 = vmatprep.subr.mxu0 0.0
        %1094 = vmatpush1.msra.mxu0 %v496
        %1095 = vmatprep.subr.mxu0 0.0
        %1096 = vmatpush1.msra.mxu0 %v497
        %1097 = vmatprep.subr.mxu0 0.0
        %1098 = vmatpush1.msra.mxu0 %v498
        %1099 = vmatprep.subr.mxu0 0.0
        %1100 = vmatpush1.msra.mxu0 %v499
        %1101 = vmatprep.subr.mxu0 0.0
        %1102 = vmatpush1.msra.mxu0 %v500
        %1103 = vmatprep.subr.mxu0 0.0
        %1104 = vmatpush1.msra.mxu0 %v501
        %1105 = vmatprep.subr.mxu0 0.0
        %1106 = vmatpush1.msra.mxu0 %v502
        %1107 = vmatprep.mubr.f32.mxu0 %v605
        %1108 = vmatmul.mubr.f32.gmra.mrb[0].mxu0 %v597
        %v1109 = vpop.f32.mrb[0].mxu0
        %v1110 = vadd.f32 %v1040, %v1109
        %v1111 = vpop.f32.mrb[0].mxu0
        %1112 = vdwg.mxu0
        %1113 = vmatprep.subr.mxu0 0.0
        %1114 = vmatpush1.msra.mxu0 %v503
        %1115 = vmatprep.subr.mxu0 0.0
        %1116 = vmatpush1.msra.mxu0 %v504
        %1117 = vmatprep.subr.mxu0 0.0
        %1118 = vmatpush1.msra.mxu0 %v505
        %1119 = vmatprep.subr.mxu0 0.0
        %1120 = vmatpush1.msra.mxu0 %v506
        %1121 = vmatprep.subr.mxu0 0.0
        %1122 = vmatpush1.msra.mxu0 %v507
        %1123 = vmatprep.subr.mxu0 0.0
        %1124 = vmatpush1.msra.mxu0 %v508
        %1125 = vmatprep.subr.mxu0 0.0
        %1126 = vmatpush1.msra.mxu0 %v509
        %1127 = vmatprep.subr.mxu0 0.0
        %1128 = vmatpush1.msra.mxu0 %v510
        %1129 = vmatprep.subr.mxu0 0.0
        %1130 = vmatpush1.msra.mxu0 %v511
        %1131 = vmatprep.subr.mxu0 0.0
        %1132 = vmatpush1.msra.mxu0 %v512
        %1133 = vmatprep.subr.mxu0 0.0
        %1134 = vmatpush1.msra.mxu0 %v513
        %1135 = vmatprep.subr.mxu0 0.0
        %1136 = vmatpush1.msra.mxu0 %v514
        %1137 = vmatprep.subr.mxu0 0.0
        %1138 = vmatpush1.msra.mxu0 %v515
        %1139 = vmatprep.subr.mxu0 0.0
        %1140 = vmatpush1.msra.mxu0 %v516
        %1141 = vmatprep.subr.mxu0 0.0
        %1142 = vmatpush1.msra.mxu0 %v517
        %1143 = vmatprep.subr.mxu0 0.0
        %1144 = vmatpush1.msra.mxu0 %v518
        %1145 = vmatprep.subr.mxu0 0.0
        %1146 = vmatpush1.msra.mxu0 %v519
        %1147 = vmatprep.subr.mxu0 0.0
        %1148 = vmatpush1.msra.mxu0 %v520
        %1149 = vmatprep.subr.mxu0 0.0
        %1150 = vmatpush1.msra.mxu0 %v521
        %1151 = vmatprep.subr.mxu0 0.0
        %1152 = vmatpush1.msra.mxu0 %v522
        %1153 = vmatprep.subr.mxu0 0.0
        %1154 = vmatpush1.msra.mxu0 %v523
        %1155 = vmatprep.subr.mxu0 0.0
        %1156 = vmatpush1.msra.mxu0 %v524
        %1157 = vmatprep.subr.mxu0 0.0
        %1158 = vmatpush1.msra.mxu0 %v525
        %1159 = vmatprep.subr.mxu0 0.0
        %1160 = vmatpush1.msra.mxu0 %v526
        %1161 = vmatprep.subr.mxu0 0.0
        %1162 = vmatpush1.msra.mxu0 %v527
        %1163 = vmatprep.subr.mxu0 0.0
        %1164 = vmatpush1.msra.mxu0 %v528
        %1165 = vmatprep.subr.mxu0 0.0
        %1166 = vmatpush1.msra.mxu0 %v529
        %1167 = vmatprep.subr.mxu0 0.0
        %1168 = vmatpush1.msra.mxu0 %v530
        %1169 = vmatprep.subr.mxu0 0.0
        %1170 = vmatpush1.msra.mxu0 %v531
        %1171 = vmatprep.subr.mxu0 0.0
        %1172 = vmatpush1.msra.mxu0 %v532
        %1173 = vmatprep.subr.mxu0 0.0
        %1174 = vmatpush1.msra.mxu0 %v533
        %1175 = vmatprep.subr.mxu0 0.0
        %1176 = vmatpush1.msra.mxu0 %v534
        %1177 = vmatprep.mubr.f32.mxu0 %v606
        %1178 = vmatmul.mubr.f32.gmra.mrb[0].mxu0 %v604
        %v1179 = vpop.f32.mrb[0].mxu0
        %v1180 = vadd.f32 %v1110, %v1179
        %v1181 = vpop.f32.mrb[0].mxu0
        %1182 = vdwg.mxu0
        %v1183 = vadd.f32 %v274, %v1180
        %1184 = vst [vmem:[#allocation2] sm:$0x3] %v1183
        %p1185 = scmp.eq.s32.totalorder %s28, 1
        // Predicated region
        $region49: #{tpu_custom_call.1} parent=31 // pred_check
          %p1186 = pneg %p1185
        $region50: #{tpu_custom_call.1} parent=31 // pred_check_branch
          %1188 = sbr.rel (%p1186) target = $region52
        $region51: #{tpu_custom_call.1} parent=31 // pred_region
          %v1189 = vld [vmem:[#allocation2] sm:$0x3]
          %v1190 = vld [vmem:[#allocation8] sm:$0x1]
          %v1192 = vlaneseq
          %v1193 = vshrl.u32 %v1192, 7
          %v1194 = vsub.s32 0, %v1193
          %v1195 = vrot.slane %v1190, %v1194
          %v1197 = vadd.f32 %v1189, %v1195
          %1198 = vst [vmem:[#allocation9] sm:$0x3] %v1197
        $region52: #{tpu_custom_call.1} parent=31 // pred_fallthru
          _
        // Predicated region
        $region53: #{tpu_custom_call.1} parent=31 // pred_check
          %p1199 = pneg %p142
        $region54: #{tpu_custom_call.1} parent=31 // pred_check_branch
          %1201 = sbr.rel (%p1199) target = $region56
        $region55: #{tpu_custom_call.1} parent=31 // pred_region
          %s1203 = ssub.s32 32, 32
          %1204 = vsyncadd [#allocation5], %s1203
          %s1205 = sadd.s32 %s27, %s26
          %s1206 = smul.addr %s1205, 32
          %s1207 = scalar_lea.hbm %s3, %s1206
          %s1209 = sshll.u32 [#allocation9], 4
          %s1210 = int_to_ptr.vmem [resolvable:$true] %s1209
          %1212 = dma.vmem_to_hbm [thread:$0]  %s1210, 32, %s1207, [#allocation5]
        $region56: #{tpu_custom_call.1} parent=31 // pred_fallthru
          _
        // Predicated region
        $region57: #{tpu_custom_call.1} parent=31 // pred_check
          %p1213 = pneg %p142
        $region58: #{tpu_custom_call.1} parent=31 // pred_check_branch
          %1215 = sbr.rel (%p1213) target = $region60
        $region59: #{tpu_custom_call.1} parent=31 // pred_region
          %1216 = dma.done [#allocation5], 32
        $region60: #{tpu_custom_call.1} parent=31 // pred_fallthru
          _
      $region32: #{tpu_custom_call.1} parent=5 // pred_fallthru
        _
      %p1217 = scmp.le.s32.totalorder 2, %s16
      // Predicated region
      $region61: #{tpu_custom_call.1} parent=5 // pred_check
        %p1218 = pneg %p1217
      $region62: #{tpu_custom_call.1} parent=5 // pred_check_branch
        %1220 = sbr.rel (%p1218) target = $region64
      $region63: #{tpu_custom_call.1} parent=5 // pred_region
        %s1221 = ssub.s32 %s16, 2
      $region64: #{tpu_custom_call.1} parent=5 // pred_fallthru
        _
    $region6: #{tpu_custom_call.1} parent=1 // loop_footer
      %s20 = sadd.s32 1, %s16
    $region7: #{tpu_custom_call.1} parent=1 // loop_footer_branch
      %15 = sbr.rel target = $region3
    $region8: #{tpu_custom_call.1} parent=1 // loop_exit
      _
    %1222 = vsyncpa [#allocation4], 1
    %s1223 = scalar_lea.sflag [#allocation4], 1
    %1224 = vsyncpa %s1223, 1
    %1225 = vsyncpa [#allocation7], 1
    %s1226 = scalar_lea.sflag [#allocation7], 1
    %1227 = vsyncpa %s1226, 1
    %1228 = vsyncpa [#allocation5], 1
    %s1229 = scalar_lea.sflag [#allocation5], 1
    %1230 = vsyncpa %s1229, 1

</llo_original>
